<compile_context>
chip_gen: v5e
topology: v5e:2x2
jax: 0.10.0
libtpu: 0.0.40
codegen_flags: <defaults>
</compile_context>

<pallas_src>
import functools

import jax
import jax.numpy as jnp
from jax.experimental import pallas as pl
from jax.experimental.pallas import tpu as pltpu


def _round_up(a, b):
    return (a + b - 1) // b * b


def _encoder_kernel(x_ref, tab_ref, o_ref, *, num_feats, tile_n, k_pad):
    # x_ref:   (tile_n, num_feats) int32, per-feature vocab offsets pre-added.
    # tab_ref: (k_pad, e_pad) bf16 concatenated embedding table (VMEM-resident).
    # o_ref:   (tile_n, e_pad) f32 lane-dense output tile.
    x_tile = x_ref[...]                                            # load x once
    cols = jax.lax.broadcasted_iota(jnp.int32, (tile_n, k_pad), 1)
    oh = jnp.zeros((tile_n, k_pad), jnp.float32)
    # Static tiny-F loop builds the combined one-hot over the concatenated
    # vocab axis (disjoint ranges -> sum of per-feature one-hots is the fused
    # one-hot). All compares are against the single in-register x tile.
    for i in range(num_feats):
        idx = jax.lax.slice(x_tile, (0, i), (tile_n, i + 1))       # (tile_n, 1)
        oh = oh + (idx == cols).astype(jnp.float32)
    onehot = oh.astype(jnp.bfloat16)                               # exact 0/1
    # Single MXU contraction K = sum(feature vocab sizes), f32 accumulation.
    o_ref[...] = jnp.dot(onehot, tab_ref[...],
                         preferred_element_type=jnp.float32)


def prepare_tables(tables_list, *, lane=128, sublane=8):
    """Concatenate per-feature tables along the vocab axis, pad K to a sublane
    multiple and EMB_DIM to a lane multiple, cast to bf16. Returns (table, offsets)."""
    dims = [int(t.shape[0]) for t in tables_list]
    emb_dim = int(tables_list[0].shape[1])
    offsets = [0]
    for d in dims[:-1]:
        offsets.append(offsets[-1] + d)
    cat = jnp.concatenate(tables_list, axis=0)                     # (sum_dims, E) f32
    sum_dims = cat.shape[0]
    k_pad = _round_up(sum_dims, sublane)
    e_pad = _round_up(emb_dim, lane)
    cat = jnp.pad(cat, ((0, k_pad - sum_dims), (0, e_pad - emb_dim)))
    return cat.astype(jnp.bfloat16), jnp.asarray(offsets, jnp.int32)


def categorical_encoder(x, table_cat, offsets, emb_dim, *, tile_n=None):
    """x: (N, F) int32 category indices; table_cat: (K_PAD, E_PAD) bf16;
    offsets: (F,) int32 exclusive cumulative vocab sizes. Returns (N, emb_dim) f32."""
    n, num_feats = x.shape
    k_pad, e_pad = table_cat.shape
    if tile_n is None:
        # Big tiles amortize the ~0.35us/step overhead; small batches round to 8.
        tile_n = min(512, _round_up(n, 8))
    n_pad = _round_up(n, tile_n)

    x_off = x.astype(jnp.int32) + offsets[None, :].astype(jnp.int32)
    if n_pad != n:
        x_off = jnp.pad(x_off, ((0, n_pad - n), (0, 0)))           # pad rows discarded

    kernel = functools.partial(_encoder_kernel, num_feats=num_feats,
                               tile_n=tile_n, k_pad=k_pad)

    out = pl.pallas_call(
        kernel,
        out_shape=jax.ShapeDtypeStruct((n_pad, e_pad), jnp.float32),
        grid_spec=pltpu.PrefetchScalarGridSpec(
            num_scalar_prefetch=0,
            grid=(n_pad // tile_n,),
            in_specs=[
                pl.BlockSpec((tile_n, num_feats), lambda i: (i, 0)),   # x tile
                pl.BlockSpec((k_pad, e_pad), lambda i: (0, 0)),        # resident table
            ],
            out_specs=pl.BlockSpec((tile_n, e_pad), lambda i: (i, 0)),
        ),
        compiler_params=pltpu.CompilerParams(
            dimension_semantics=("parallel",)),  # v7x: batch split across 2 TCs
    )(x_off, table_cat)
    return out[:n, :emb_dim]


def init_embedding_tables(key, full_feature_dims, emb_dim):
    """Xavier-uniform init of each nn.Embedding(dim, emb_dim) (list of f32 arrays)."""
    tables = []
    for i, dim in enumerate(full_feature_dims):
        k = jax.random.fold_in(key, i)
        bound = (6.0 / (dim + emb_dim)) ** 0.5  # torch.nn.init.xavier_uniform_
        tables.append(jax.random.uniform(k, (dim, emb_dim), jnp.float32, -bound, bound))
    return tables


def reference(x, tables_list):
    out = 0.0
    for i in range(x.shape[1]):
        out = out + jnp.take(tables_list[i], x[:, i], axis=0)
    return out


if __name__ == "__main__":
    key = jax.random.PRNGKey(0)

    # Small shapes consistent with the module's forward.
    emb_dim = 32
    full_feature_dims = [6, 5, 7]   # per-feature vocabulary sizes
    n = 8                           # batch of nodes
    num_feats = len(full_feature_dims)

    # Parameters (deterministic, in-script).
    tables_list = init_embedding_tables(jax.random.fold_in(key, 100),
                                        full_feature_dims, emb_dim)
    table_cat, offsets = prepare_tables(tables_list)

    # Integer categorical inputs: x[:, i] in [0, full_feature_dims[i]).
    # TODO(synk): like the padded-table version, out-of-range indices silently
    # contribute a zero row instead of raising as torch.nn.Embedding would.
    cols = []
    for i, dim in enumerate(full_feature_dims):
        k = jax.random.fold_in(key, 200 + i)
        cols.append(jax.random.randint(k, (n,), 0, dim, dtype=jnp.int32))
    x = jnp.stack(cols, axis=1)  # (N, F) int32

    out = categorical_encoder(x, table_cat, offsets, emb_dim)
    out = jax.block_until_ready(out)

    # Pure-JAX reference check against the bf16-rounded tables (kernel stores
    # tables in bf16; the one-hot matmul itself is exact in f32 accumulation).
    tables_bf16 = [t.astype(jnp.bfloat16).astype(jnp.float32) for t in tables_list]
    ref = reference(x, tables_bf16)
    assert out.shape == (n, emb_dim)
    assert jnp.allclose(out, ref, atol=1e-5, rtol=1e-5), "mismatch vs reference"

    print("KERNEL_OK")
</pallas_src>

<mosaic_0001>
module attributes {stable_mosaic.version = 11 : i64} {
  func.func @_encoder_kernel(%arg0: i32, %arg1: memref<8x3xi32, #tpu.memory_space<vmem>>, %arg2: memref<24x128xbf16, #tpu.memory_space<vmem>>, %arg3: memref<8x128xf32, #tpu.memory_space<vmem>>) attributes {dimension_semantics = [#tpu.dimension_semantics<parallel>], iteration_bounds = array<i64: 1>, scalar_prefetch = 0 : i64, scratch_operands = 0 : i64, tpu.core_type = #tpu.core_type<tc>, window_params = [{transform_indices = @transform_0, window_bounds = array<i64: 8, 3>}, {pipeline_mode = #tpu.pipeline_mode<synchronous>, transform_indices = @transform_1, window_bounds = array<i64: 24, 128>}, {transform_indices = @transform_2, window_bounds = array<i64: 8, 128>}]} {
    %c0 = arith.constant 0 : index
    %c0_0 = arith.constant 0 : index
    %0 = vector.load %arg1[%c0, %c0_0] : memref<8x3xi32, #tpu.memory_space<vmem>>, vector<8x3xi32>
    %1 = tpu.iota {dimensions = array<i32: 1>} : vector<8x24xi32>
    %cst = arith.constant 0.000000e+00 : f32
    %2 = vector.broadcast %cst : f32 to vector<8x24xf32>
    %3 = vector.extract_strided_slice %0 {offsets = [0, 0], sizes = [8, 1], strides = [1, 1]} : vector<8x3xi32> to vector<8x1xi32>
    %4 = vector.broadcast %3 : vector<8x1xi32> to vector<8x24xi32>
    %5 = arith.cmpi eq, %4, %1 : vector<8x24xi32>
    %6 = arith.extui %5 : vector<8x24xi1> to vector<8x24xi32>
    %7 = arith.sitofp %6 : vector<8x24xi32> to vector<8x24xf32>
    %8 = arith.addf %2, %7 : vector<8x24xf32>
    %9 = vector.extract_strided_slice %0 {offsets = [0, 1], sizes = [8, 1], strides = [1, 1]} : vector<8x3xi32> to vector<8x1xi32>
    %10 = vector.broadcast %9 : vector<8x1xi32> to vector<8x24xi32>
    %11 = arith.cmpi eq, %10, %1 : vector<8x24xi32>
    %12 = arith.extui %11 : vector<8x24xi1> to vector<8x24xi32>
    %13 = arith.sitofp %12 : vector<8x24xi32> to vector<8x24xf32>
    %14 = arith.addf %8, %13 : vector<8x24xf32>
    %15 = vector.extract_strided_slice %0 {offsets = [0, 2], sizes = [8, 1], strides = [1, 1]} : vector<8x3xi32> to vector<8x1xi32>
    %16 = vector.broadcast %15 : vector<8x1xi32> to vector<8x24xi32>
    %17 = arith.cmpi eq, %16, %1 : vector<8x24xi32>
    %18 = arith.extui %17 : vector<8x24xi1> to vector<8x24xi32>
    %19 = arith.sitofp %18 : vector<8x24xi32> to vector<8x24xf32>
    %20 = arith.addf %14, %19 : vector<8x24xf32>
    %21 = arith.truncf %20 : vector<8x24xf32> to vector<8x24xbf16>
    %c0_1 = arith.constant 0 : index
    %c0_2 = arith.constant 0 : index
    %22 = vector.load %arg2[%c0_1, %c0_2] : memref<24x128xbf16, #tpu.memory_space<vmem>>, vector<24x128xbf16>
    %cst_3 = arith.constant dense<0.000000e+00> : vector<8x128xf32>
    %23 = tpu.matmul %21, %22, %cst_3 {dimension_numbers = #tpu.dot_dimension_numbers<[1], [0], [0], [1], [0, 0, 1, 1], [], []>} : vector<8x24xbf16>, vector<24x128xbf16>, vector<8x128xf32> -> vector<8x128xf32>
    %c0_4 = arith.constant 0 : index
    %c0_5 = arith.constant 0 : index
    %24 = vector.load %arg3[%c0_4, %c0_5] : memref<8x128xf32, #tpu.memory_space<vmem>>, vector<8x128xf32>
    tpu.vector_store %arg3[%c0_4, %c0_5], %23 {strides = array<i32>} : memref<8x128xf32, #tpu.memory_space<vmem>>, vector<8x128xf32>,
    return
  }
  func.func @transform_0(%arg0: i32) -> (i32, i32) {
    %c0_i32 = arith.constant 0 : i32
    %c0_i32_0 = arith.constant 0 : i32
    return %arg0, %c0_i32 : i32, i32
  }
  func.func @transform_1(%arg0: i32) -> (i32, i32) {
    %c0_i32 = arith.constant 0 : i32
    %c0_i32_0 = arith.constant 0 : i32
    %c0_i32_1 = arith.constant 0 : i32
    return %c0_i32, %c0_i32_0 : i32, i32
  }
  func.func @transform_2(%arg0: i32) -> (i32, i32) {
    %c0_i32 = arith.constant 0 : i32
    %c0_i32_0 = arith.constant 0 : i32
    return %arg0, %c0_i32 : i32, i32
  }
}

</mosaic_0001>

<llo_original>
// kernel: tpu_custom_call.1
$region0: #{tpu_custom_call.1}
  #allocation0 [shape = 'u32[]', space=smem, size = 0x4, offset = 0x4, fixed_abs, tag = 'smem constant byte address 0x4 - core index']
  #allocation1 [shape = 'u32[72,128]{1,0:T(1,128)}', space=vmem, size = 0x9000, scoped, tag = 'internal scratch']
  %s0 = inlined_call_operand.vmem [shape: s32[8,3], index: 0, kind: input, shape index: {}]
  %s1 = inlined_call_operand.vmem [shape: bf16[24,128], index: 1, kind: input, shape index: {}]
  %s2 = inlined_call_operand.hbm [shape: f32[8,128], index: 2, kind: output, shape index: {}]
  %s3 = sld [smem:[#allocation0]]
  $region18: #{tpu_custom_call.1} parent=0
    _
  %s5 = ssub.s32 1, %s3
  %s6 = scalar_select 0, %s5, %s3
  $region1: #{tpu_custom_call.1} parent=0
    #allocation2 [shape = 'u8[4096]{0}', space=vmem, size = 0x1000, scoped, tag = 'output window, operand 0, single buffered']
    #allocation3 [shape = 's32[1]{0}', space=sflag, size = 0x4, scoped, tag = 'scoped memory for tpu_custom_call.1']
    %7 = vsyncpa [#allocation3], 0
    // Predicated region
    $region2: #{tpu_custom_call.1} parent=1 // pred_check
      _
    $region3: #{tpu_custom_call.1} parent=1 // pred_check_branch
      %9 = sbr.rel (0) target = $region5
    $region4: #{tpu_custom_call.1} parent=1 // pred_region
      _
    $region5: #{tpu_custom_call.1} parent=1 // pred_fallthru
      _
    // Predicated region
    $region6: #{tpu_custom_call.1} parent=1 // pred_check
      _
    $region7: #{tpu_custom_call.1} parent=1 // pred_check_branch
      %11 = sbr.rel (0) target = $region9
    $region8: #{tpu_custom_call.1} parent=1 // pred_region
      _
    $region9: #{tpu_custom_call.1} parent=1 // pred_fallthru
      _
    %v13 = vld [vmem:[%s0] sm:$0xff]
    %v14 = vlaneseq
    %v15 = vand.u32 %v14, 127
    %16 = vset.pattern.permute.xlu0 0
    %17 = vperm.xlu0 %16, %v13
    %v18 = vpop.permute.xlu0 %17
    %vm19 = vcmp.eq.s32.totalorder %v18, %v15
    %v20 = vsel %vm19, 1, 0
    %v21 = vcvt.s32.f32 %v20
    %v22 = vadd.f32 %v21, 0.0
    %23 = vset.pattern.permute.xlu0 1
    %24 = vperm.xlu0 %23, %v13
    %v25 = vpop.permute.xlu0 %24
    %vm26 = vcmp.eq.s32.totalorder %v25, %v15
    %v27 = vsel %vm26, 1, 0
    %v28 = vcvt.s32.f32 %v27
    %v29 = vadd.f32 %v22, %v28
    %30 = vset.pattern.permute.xlu0 2
    %31 = vperm.xlu0 %30, %v13
    %v32 = vpop.permute.xlu0 %31
    %vm33 = vcmp.eq.s32.totalorder %v32, %v15
    %v34 = vsel %vm33, 1, 0
    %v35 = vcvt.s32.f32 %v34
    %v36 = vadd.f32 %v29, %v35
    %v37 = vpack.c.bf16 %v36, %v36
    %v38 = vld [vmem:[%s1] sm:$0xf]
    %v39 = vld [vmem:[%s1 + $0x4] sm:$0xf]
    %v40 = vld [vmem:[%s1 + $0x8] sm:$0xf]
    %v44 = vunpack.c.l.b16 %v38
    %v45 = vunpack.c.l.b16 %v39
    %v46 = vunpack.c.l.b16 %v40
    %v47 = vpack.c.b16 %v45, %v44
    %v48 = vpack.c.b16 %v46, %v46
    %vm50 = vcmask 195584
    %v52 = vsel %vm50, %v37, 0
    %vm54 = vcmask 1043456
    %v56 = vsel %vm54, %v48, 0
    %58 = vmatpush.bf16.msra.mxu0 0
    %59 = vmatpush.bf16.msra.mxu0 0
    %60 = vmatpush.bf16.msra.mxu0 0
    %61 = vmatpush.bf16.msra.mxu0 0
    %62 = vmatpush.bf16.msra.mxu0 0
    %63 = vmatpush.bf16.msra.mxu0 0
    %64 = vmatpush.bf16.msra.mxu0 %v56
    %65 = vmatpush.bf16.msra.mxu0 %v47
    %66 = vmatmul.bf16.gmra.mxu0 %v52
    %v67 = vpop.f32.mrf.mxu0
    %v68 = vadd.f32 0.0, %v67
    %v69 = vpop.f32.mrf.mxu0
    %70 = vdwg.mxu0
    %71 = vst [vmem:[#allocation2] sm:$0xff] %v68
    // Predicated region
    $region10: #{tpu_custom_call.1} parent=1 // pred_check
      _
    $region11: #{tpu_custom_call.1} parent=1 // pred_check_branch
      %73 = sbr.rel (0) target = $region13
    $region12: #{tpu_custom_call.1} parent=1 // pred_region
      %75 = vsyncadd [#allocation3], 0
      %s77 = sshll.u32 [#allocation2], 4
      %s78 = int_to_ptr.vmem [resolvable:$true] %s77
      %s79 = sshll.u32 %s2, 4
      %s80 = int_to_ptr.hbm [resolvable:$true] %s79
      %82 = dma.vmem_to_hbm [thread:$0]  %s78, 128, %s80, [#allocation3]
    $region13: #{tpu_custom_call.1} parent=1 // pred_fallthru
      _
    // Predicated region
    $region14: #{tpu_custom_call.1} parent=1 // pred_check
      _
    $region15: #{tpu_custom_call.1} parent=1 // pred_check_branch
      %84 = sbr.rel (0) target = $region17
    $region16: #{tpu_custom_call.1} parent=1 // pred_region
      %86 = dma.done [#allocation3], 128
    $region17: #{tpu_custom_call.1} parent=1 // pred_fallthru
      _
    %87 = vsyncpa [#allocation3], 1

</llo_original>
